<compile_context>
chip_gen: v7x
topology: tpu7x:2x2x1
jax: 0.10.0
libtpu: 0.0.40
codegen_flags: <defaults>
</compile_context>

<pallas_src>
import functools

import jax
import jax.numpy as jnp
from jax.experimental import pallas as pl
from jax.experimental.pallas import tpu as pltpu


# --------------------------------------------------------------------------
# Fused kernel: global avg+max pooling over spatial, then MLP + sigmoid.
# x is laid out (B, C, H*W); grid = (B, spatial_tiles).
# --------------------------------------------------------------------------
def _ca_kernel(x_ref, w1_ref, w2_ref, o_ref, sum_ref, max_ref, *, hw, tile_cols):
    # x_ref:   (1, C, T)      one spatial tile of one batch element (native dtype)
    # w1_ref:  (hidden, C)    fc1 weight, VMEM-resident (constant index_map)
    # w2_ref:  (C, hidden)    fc2 weight, VMEM-resident
    # o_ref:   (1, C, 1)      sigmoid channel-attention for this batch row
    # sum_ref: (C, 1) f32     running spatial sum  (VMEM scratch)
    # max_ref: (C, 1) f32     running spatial max  (VMEM scratch)
    k = pl.program_id(1)
    last = pl.num_programs(1) - 1

    @pl.when(k == 0)
    def _init():
        sum_ref[...] = jnp.zeros_like(sum_ref)
        max_ref[...] = jnp.full_like(max_ref, -jnp.inf)

    tile = x_ref[0]  # (C, T): spatial on lanes, channels on sublanes

    def _accumulate(t_sum, t_max):
        # Mosaic folds the lane reduction chunk-wise on the VPU; only the final
        # 128->1 fold per tile touches the XLU and it hides under the tile DMA
        # of this memory-bound pass.
        sum_ref[...] += jnp.sum(t_sum, axis=-1, keepdims=True, dtype=jnp.float32)
        max_ref[...] = jnp.maximum(
            max_ref[...],
            jnp.max(t_max, axis=-1, keepdims=True).astype(jnp.float32))

    if hw % tile_cols == 0:
        # No padded columns ever: single unmasked path for every tile.
        _accumulate(tile, tile)
    else:
        @pl.when(k != last)              # fast unmasked path (interior tiles)
        def _interior():
            _accumulate(tile, tile)

        @pl.when(k == last)              # masked path, final partial tile only
        def _tail():
            col = k * tile_cols + jax.lax.broadcasted_iota(
                jnp.int32, (1, tile_cols), 1)        # (1, T), broadcast over C
            valid = col < hw
            _accumulate(jnp.where(valid, tile, jnp.zeros_like(tile)),
                        jnp.where(valid, tile, jnp.full_like(tile, -jnp.inf)))

    @pl.when(k == last)
    def _finalize():
        # Pooled column vectors for this batch row, stacked on lanes: (C, 2).
        v_avg = sum_ref[...] * jnp.float32(1.0 / hw)      # sum -> mean
        v = jnp.concatenate([v_avg, max_ref[...]], axis=1)

        w1 = w1_ref[...].astype(jnp.float32)              # (hidden, C)
        w2 = w2_ref[...].astype(jnp.float32)              # (C, hidden)
        h = jnp.maximum(jnp.dot(w1, v, preferred_element_type=jnp.float32), 0.0)
        o2 = jnp.dot(w2, h, preferred_element_type=jnp.float32)   # (C, 2)
        # Sum the fc2 outputs of both branches == avg_out + max_out (exact,
        # independent of whether fc2 ever gains a bias).
        logits = o2[:, 0:1] + o2[:, 1:2]                           # (C, 1)
        o_ref[0] = jax.nn.sigmoid(logits).astype(o_ref.dtype)


def _tile_cols_and_vmem_limit(hw, c, itemsize):
    """Spatial tile width (multiple of 128 lanes, or the full H*W if small) and
    a matching scoped-VMEM limit, tuned per TPU generation."""
    vmem_cap = 128 * 1024 * 1024
    try:
        info = pltpu.get_tpu_info()
        vmem_cap = int(getattr(info, "vmem_capacity_bytes", vmem_cap))
    except Exception:
        pass  # interpret mode / query unavailable -> conservative default

    if vmem_cap <= 64 * 1024 * 1024:
        # v7x-class: 64 MiB VMEM per TC, ~3.2 TB/s HBM -> big tiles to amortize
        # the ~0.35us per-step overhead; 2 x 10 MiB double-buffered + scratch
        # stays well under a 40 MiB scoped limit.
        target_block = 10 * 1024 * 1024
        vmem_limit = 40 * 1024 * 1024
    else:
        # v5e/v6e-class: 128 MiB physical VMEM; 2 x 8 MiB double-buffered input
        # fits comfortably once the scoped limit is raised to 32 MiB.
        target_block = 8 * 1024 * 1024
        vmem_limit = 32 * 1024 * 1024

    if hw * c * itemsize <= target_block:
        return int(hw), vmem_limit
    cols = target_block // (c * itemsize)
    cols = max(128, (cols // 128) * 128)
    return int(min(cols, hw)), vmem_limit


def channel_attention(x_nchw, w1, w2, *, tile_cols=None):
    """x_nchw: (B, C, H, W); w1: (C//ratio, C) fc1 weight; w2: (C, C//ratio) fc2.

    Returns the sigmoid channel-attention map of shape (B, C, 1, 1)."""
    B, C, H, W = x_nchw.shape
    hidden = w1.shape[0]
    assert w1.shape == (hidden, C) and w2.shape == (C, hidden)
    HW = H * W

    # Free reshape of the NCHW buffer -- no HBM transpose pass.
    x = x_nchw.reshape(B, C, HW)

    T_auto, vmem_limit = _tile_cols_and_vmem_limit(HW, C, x.dtype.itemsize)
    T = int(tile_cols) if tile_cols is not None else T_auto
    K = pl.cdiv(HW, T)

    itemsize = x.dtype.itemsize
    cost = pl.CostEstimate(
        flops=2 * B * C * HW + 4 * B * hidden * C,   # pool pass + tiny MLP
        transcendentals=B * C,                       # sigmoid
        bytes_accessed=B * C * HW * itemsize + 2 * hidden * C * 4 + B * C * itemsize,
    )

    out = pl.pallas_call(
        functools.partial(_ca_kernel, hw=HW, tile_cols=T),
        out_shape=jax.ShapeDtypeStruct((B, C, 1), x_nchw.dtype),
        grid=(B, K),
        in_specs=[pl.BlockSpec((1, C, T), lambda b, k: (b, 0, k)),
                  pl.BlockSpec((hidden, C), lambda b, k: (0, 0)),
                  pl.BlockSpec((C, hidden), lambda b, k: (0, 0))],
        out_specs=pl.BlockSpec((1, C, 1), lambda b, k: (b, 0, 0)),
        scratch_shapes=[pltpu.VMEM((C, 1), jnp.float32),
                        pltpu.VMEM((C, 1), jnp.float32)],
        compiler_params=pltpu.CompilerParams(
            dimension_semantics=("parallel", "arbitrary"),
            vmem_limit_bytes=vmem_limit),
        cost_estimate=cost,
    )(x, w1, w2)

    # TODO(synk): on v7x (2 TCs/chip) with very small B, also split the spatial
    # reduction across cores (grid=(B, 2, K//2) with the size-2 axis "parallel"
    # and per-core partial sum/max combined in the finalize) to use both
    # TensorCores; it is a no-op on single-TC v5e/v6e so it is omitted here.
    return out.reshape(B, C, 1, 1)


def _reference(x_nchw, w1, w2):
    # Pure-JAX reference of the PyTorch forward pass.
    avg = jnp.mean(x_nchw, axis=(2, 3))                      # (B, C)
    mx = jnp.max(x_nchw, axis=(2, 3))                        # (B, C)

    def mlp(v):
        h = jnp.maximum(v @ w1.T, 0.0)                       # (B, hidden)
        return h @ w2.T                                      # (B, C)

    out = jax.nn.sigmoid(mlp(avg) + mlp(mx))
    return out[:, :, None, None]


if __name__ == "__main__":
    B, C, H, W = 2, 32, 16, 16
    ratio = 16
    hidden = C // ratio  # 2

    key = jax.random.PRNGKey(0)
    kx, k1, k2, kx2 = jax.random.split(key, 4)

    x = jax.random.normal(kx, (B, C, H, W), dtype=jnp.float32)
    # Conv2d(C, C//ratio, 1, bias=False) weight is (C//ratio, C, 1, 1); the
    # trailing 1x1 is squeezed away here. Deterministic synthetic init.
    w1 = jax.random.normal(k1, (hidden, C), dtype=jnp.float32) * 0.1
    w2 = jax.random.normal(k2, (C, hidden), dtype=jnp.float32) * 0.1

    # 1) default (auto-tiled) path
    out = jax.jit(channel_attention)(x, w1, w2)
    jax.block_until_ready(out)
    ref = _reference(x, w1, w2)
    assert out.shape == (B, C, 1, 1)
    assert jnp.allclose(out, ref, atol=1e-5, rtol=1e-5)

    # 2) multi-tile path with a partial (masked) final tile: HW=272, T=128 -> K=3
    x2 = jax.random.normal(kx2, (B, C, 16, 17), dtype=jnp.float32)
    out2 = jax.jit(functools.partial(channel_attention, tile_cols=128))(x2, w1, w2)
    jax.block_until_ready(out2)
    ref2 = _reference(x2, w1, w2)
    assert jnp.allclose(out2, ref2, atol=1e-5, rtol=1e-5)

    print("KERNEL_OK")
</pallas_src>

<mosaic_0001>
module attributes {stable_mosaic.version = 11 : i64} {
  func.func @_ca_kernel(%arg0: i32, %arg1: i32, %arg2: memref<1x32x256xf32, #tpu.memory_space<vmem>>, %arg3: memref<2x32xf32, #tpu.memory_space<vmem>>, %arg4: memref<32x2xf32, #tpu.memory_space<vmem>>, %arg5: memref<1x32x1xf32, #tpu.memory_space<vmem>>, %arg6: memref<32x1xf32, #tpu.memory_space<vmem>>, %arg7: memref<32x1xf32, #tpu.memory_space<vmem>>) attributes {dimension_semantics = [#tpu.dimension_semantics<parallel>, #tpu.dimension_semantics<arbitrary>], iteration_bounds = array<i64: 2, 1>, scalar_prefetch = 0 : i64, scratch_operands = 2 : i64, tpu.core_type = #tpu.core_type<tc>, window_params = [{transform_indices = @transform_0, window_bounds = array<i64: 1, 32, 256>}, {pipeline_mode = #tpu.pipeline_mode<synchronous>, transform_indices = @transform_1, window_bounds = array<i64: 2, 32>}, {pipeline_mode = #tpu.pipeline_mode<synchronous>, transform_indices = @transform_2, window_bounds = array<i64: 32, 2>}, {transform_indices = @transform_3, window_bounds = array<i64: 1, 32, 1>}]} {
    %c0_i32 = arith.constant 0 : i32
    %0 = arith.cmpi eq, %arg1, %c0_i32 : i32
    %1 = arith.extui %0 : i1 to i32
    %c0_i32_0 = arith.constant 0 : i32
    %2 = arith.cmpi ne, %1, %c0_i32_0 : i32
    scf.if %2 {
      %cst_14 = arith.constant 0.000000e+00 : f32
      %18 = vector.broadcast %cst_14 : f32 to vector<32x1xf32>
      %c0_15 = arith.constant 0 : index
      %c0_16 = arith.constant 0 : index
      %19 = vector.load %arg6[%c0_15, %c0_16] : memref<32x1xf32, #tpu.memory_space<vmem>>, vector<32x1xf32>
      tpu.vector_store %arg6[%c0_15, %c0_16], %18 {strides = array<i32>} : memref<32x1xf32, #tpu.memory_space<vmem>>, vector<32x1xf32>,
      %cst_17 = arith.constant 0xFF800000 : f32
      %20 = vector.broadcast %cst_17 : f32 to vector<32x1xf32>
      %c0_18 = arith.constant 0 : index
      %c0_19 = arith.constant 0 : index
      %21 = vector.load %arg7[%c0_18, %c0_19] : memref<32x1xf32, #tpu.memory_space<vmem>>, vector<32x1xf32>
      tpu.vector_store %arg7[%c0_18, %c0_19], %20 {strides = array<i32>} : memref<32x1xf32, #tpu.memory_space<vmem>>, vector<32x1xf32>,
    } else {
    }
    %c0 = arith.constant 0 : index
    %c0_1 = arith.constant 0 : index
    %c0_2 = arith.constant 0 : index
    %3 = vector.load %arg2[%c0, %c0_1, %c0_2] : memref<1x32x256xf32, #tpu.memory_space<vmem>>, vector<1x32x256xf32>
    %4 = vector.shape_cast %3 : vector<1x32x256xf32> to vector<32x256xf32>
    %c0_3 = arith.constant 0 : index
    %c0_4 = arith.constant 0 : index
    %5 = vector.load %arg6[%c0_3, %c0_4] : memref<32x1xf32, #tpu.memory_space<vmem>>, vector<32x1xf32>
    %cst = arith.constant dense<0.000000e+00> : vector<32xf32>
    %6 = vector.multi_reduction <add>, %4, %cst [1] : vector<32x256xf32> to vector<32xf32>
    %7 = vector.shape_cast %6 : vector<32xf32> to vector<32x1xf32>
    %8 = arith.addf %5, %7 : vector<32x1xf32>
    %c0_5 = arith.constant 0 : index
    %c0_6 = arith.constant 0 : index
    %9 = vector.load %arg6[%c0_5, %c0_6] : memref<32x1xf32, #tpu.memory_space<vmem>>, vector<32x1xf32>
    tpu.vector_store %arg6[%c0_5, %c0_6], %8 {strides = array<i32>} : memref<32x1xf32, #tpu.memory_space<vmem>>, vector<32x1xf32>,
    %c0_7 = arith.constant 0 : index
    %c0_8 = arith.constant 0 : index
    %10 = vector.load %arg7[%c0_7, %c0_8] : memref<32x1xf32, #tpu.memory_space<vmem>>, vector<32x1xf32>
    %cst_9 = arith.constant dense<0xFF800000> : vector<32xf32>
    %11 = vector.multi_reduction <maximumf>, %4, %cst_9 [1] : vector<32x256xf32> to vector<32xf32>
    %12 = vector.shape_cast %11 : vector<32xf32> to vector<32x1xf32>
    %13 = arith.maximumf %10, %12 : vector<32x1xf32>
    %c0_10 = arith.constant 0 : index
    %c0_11 = arith.constant 0 : index
    %14 = vector.load %arg7[%c0_10, %c0_11] : memref<32x1xf32, #tpu.memory_space<vmem>>, vector<32x1xf32>
    tpu.vector_store %arg7[%c0_10, %c0_11], %13 {strides = array<i32>} : memref<32x1xf32, #tpu.memory_space<vmem>>, vector<32x1xf32>,
    %c0_i32_12 = arith.constant 0 : i32
    %15 = arith.cmpi eq, %arg1, %c0_i32_12 : i32
    %16 = arith.extui %15 : i1 to i32
    %c0_i32_13 = arith.constant 0 : i32
    %17 = arith.cmpi ne, %16, %c0_i32_13 : i32
    scf.if %17 {
      %c0_14 = arith.constant 0 : index
      %c0_15 = arith.constant 0 : index
      %18 = vector.load %arg6[%c0_14, %c0_15] : memref<32x1xf32, #tpu.memory_space<vmem>>, vector<32x1xf32>
      %cst_16 = arith.constant 3.906250e-03 : f32
      %19 = vector.broadcast %cst_16 : f32 to vector<32x1xf32>
      %20 = arith.mulf %18, %19 : vector<32x1xf32>
      %c0_17 = arith.constant 0 : index
      %c0_18 = arith.constant 0 : index
      %21 = vector.load %arg7[%c0_17, %c0_18] : memref<32x1xf32, #tpu.memory_space<vmem>>, vector<32x1xf32>
      %22 = tpu.concatenate %20, %21 in 1 : vector<32x1xf32>, vector<32x1xf32> -> vector<32x2xf32>
      %c0_19 = arith.constant 0 : index
      %c0_20 = arith.constant 0 : index
      %23 = vector.load %arg3[%c0_19, %c0_20] : memref<2x32xf32, #tpu.memory_space<vmem>>, vector<2x32xf32>
      %c0_21 = arith.constant 0 : index
      %c0_22 = arith.constant 0 : index
      %24 = vector.load %arg4[%c0_21, %c0_22] : memref<32x2xf32, #tpu.memory_space<vmem>>, vector<32x2xf32>
      %cst_23 = arith.constant dense<0.000000e+00> : vector<2x2xf32>
      %25 = tpu.matmul %23, %22, %cst_23 {dimension_numbers = #tpu.dot_dimension_numbers<[1], [0], [0], [1], [0, 0, 1, 1], [], []>} : vector<2x32xf32>, vector<32x2xf32>, vector<2x2xf32> -> vector<2x2xf32>
      %cst_24 = arith.constant 0.000000e+00 : f32
      %26 = vector.broadcast %cst_24 : f32 to vector<2x2xf32>
      %27 = arith.maximumf %25, %26 : vector<2x2xf32>
      %cst_25 = arith.constant dense<0.000000e+00> : vector<32x2xf32>
      %28 = tpu.matmul %24, %27, %cst_25 {dimension_numbers = #tpu.dot_dimension_numbers<[1], [0], [0], [1], [0, 0, 1, 1], [], []>} : vector<32x2xf32>, vector<2x2xf32>, vector<32x2xf32> -> vector<32x2xf32>
      %29 = vector.extract_strided_slice %28 {offsets = [0, 0], sizes = [32, 1], strides = [1, 1]} : vector<32x2xf32> to vector<32x1xf32>
      %30 = vector.extract_strided_slice %28 {offsets = [0, 1], sizes = [32, 1], strides = [1, 1]} : vector<32x2xf32> to vector<32x1xf32>
      %31 = arith.addf %29, %30 : vector<32x1xf32>
      %32 = arith.negf %31 : vector<32x1xf32>
      %33 = math.exp %32 : vector<32x1xf32>
      %cst_26 = arith.constant 1.000000e+00 : f32
      %34 = vector.broadcast %cst_26 : f32 to vector<32x1xf32>
      %35 = arith.addf %34, %33 : vector<32x1xf32>
      %36 = arith.divf %34, %35 : vector<32x1xf32>
      %c0_27 = arith.constant 0 : index
      %c0_28 = arith.constant 0 : index
      %c0_29 = arith.constant 0 : index
      %37 = vector.load %arg5[%c0_27, %c0_28, %c0_29] : memref<1x32x1xf32, #tpu.memory_space<vmem>>, vector<1x32x1xf32>
      %38 = vector.shape_cast %37 : vector<1x32x1xf32> to vector<32x1xf32>
      %39 = vector.shape_cast %36 : vector<32x1xf32> to vector<1x32x1xf32>
      tpu.vector_store %arg5[%c0_27, %c0_28, %c0_29], %39 {strides = array<i32>} : memref<1x32x1xf32, #tpu.memory_space<vmem>>, vector<1x32x1xf32>,
    } else {
    }
    return
  }
  func.func @transform_0(%arg0: i32, %arg1: i32) -> (i32, i32, i32) {
    %c0_i32 = arith.constant 0 : i32
    %c0_i32_0 = arith.constant 0 : i32
    return %arg0, %c0_i32, %arg1 : i32, i32, i32
  }
  func.func @transform_1(%arg0: i32, %arg1: i32) -> (i32, i32) {
    %c0_i32 = arith.constant 0 : i32
    %c0_i32_0 = arith.constant 0 : i32
    %c0_i32_1 = arith.constant 0 : i32
    return %c0_i32, %c0_i32_0 : i32, i32
  }
  func.func @transform_2(%arg0: i32, %arg1: i32) -> (i32, i32) {
    %c0_i32 = arith.constant 0 : i32
    %c0_i32_0 = arith.constant 0 : i32
    %c0_i32_1 = arith.constant 0 : i32
    return %c0_i32, %c0_i32_0 : i32, i32
  }
  func.func @transform_3(%arg0: i32, %arg1: i32) -> (i32, i32, i32) {
    %c0_i32 = arith.constant 0 : i32
    %c0_i32_0 = arith.constant 0 : i32
    %c0_i32_1 = arith.constant 0 : i32
    return %arg0, %c0_i32, %c0_i32_0 : i32, i32, i32
  }
}

</mosaic_0001>

<llo_original>
// kernel: channel_attention.1
$region0: #{channel_attention.1}
  #allocation0 [shape = 'u32[]', space=smem, size = 0x4, offset = 0x4, fixed_abs, tag = 'smem constant byte address 0x4 - core index']
  #allocation1 [shape = 'u32[144,128]{1,0:T(1,128)}', space=vmem, size = 0x12000, scoped, tag = 'internal scratch']
  #allocation2 [shape = 'f32[32,1]{1,0:T(8,128)}', space=vmem, size = 0x4000, scoped, tag = 'scratch operand']
  #allocation3 [shape = 'f32[32,1]{1,0:T(8,128)}', space=vmem, size = 0x4000, scoped, tag = 'scratch operand']
  %s0 = inlined_call_operand.vmem [shape: f32[2,32,256], index: 0, kind: input, shape index: {}]
  %s1 = inlined_call_operand.vmem [shape: f32[2,32], index: 1, kind: input, shape index: {}]
  %s2 = inlined_call_operand.vmem [shape: f32[32,2], index: 2, kind: input, shape index: {}]
  %s3 = inlined_call_operand.vmem [shape: f32[2,32,1], index: 3, kind: output, shape index: {}]
  %s4 = sld [smem:[#allocation0]]
  $region53: #{channel_attention.1} parent=0
    _
  %s6 = ssub.s32 1, %s4
  %s7 = scalar_select 0, %s6, %s4
  loop: start=0, step=1, limit=4
  $region2: #{channel_attention.1} parent=0 // loop_pre_header
    _
  $region3: #{channel_attention.1} parent=0 // loop_header
    %s9 = sphi 0, %s13
    %p10 = scmp.ge.s32.totalorder %s9, 4
    %s16 = sphi 0, %s28
    %s17 = sphi 0, %s24
    %s18 = sphi 0, %s16
    %s19 = sphi 0, %s17
    %s20 = sphi 0, %s18
    %s21 = sphi 0, %s19
    %s33 = sphi 0, %s35
    %s36 = sphi 0, %s33
    %s37 = sphi 0, %s36
    %s53 = sphi 0, %s37
    %s57 = sphi 0, %s57
    %s59 = sphi 0, %s57
    %s60 = sphi 0, %s59
    %s74 = sphi 0, %s60
    %s78 = sphi 0, %s78
    %s80 = sphi 0, %s78
    %s81 = sphi 0, %s80
    %s95 = sphi 0, %s81
    %s101 = sphi 0, %s103
    %s104 = sphi 0, %s101
    %s105 = sphi 0, %s104
    %s121 = sphi 0, %s105
  $region4: #{channel_attention.1} parent=0 // loop_header_branch
    %12 = sbr.rel (%p10) target = $region8
  $region5: #{channel_attention.1} parent=0 // loop_body
    %s14 = ssub.s32 %s9, 1
    %s15 = ssub.s32 %s9, 2
    %s22 = sadd.s32 1, %s17
    %p23 = scmp.ge.s32.totalorder %s22, 1
    %s24 = scalar_select %p23, 0, %s22
    %s25 = sadd.s32 1, %s16
    %s26 = scalar_select %p23, %s25, %s16
    %p27 = scmp.ge.s32.totalorder %s26, 2
    %s28 = scalar_select %p27, 0, %s26
    %s29 = ssub.s32 %s16, %s28
    %s30 = ssub.s32 %s17, %s24
    %s31 = sor.u32 %s29, %s30
    %p32 = scmp.eq.s32.totalorder %s31, 0
    %s34 = sadd.s32 %s33, 1
    %s35 = scalar_select %p32, %s33, %s34
    %p38 = pneg %p32
    %p39 = scmp.eq.s32.totalorder %s9, 1
    %p40 = por %p38, %p39
    %p41 = scmp.ne.s32.totalorder %s33, %s36
    %p42 = scmp.eq.s32.totalorder %s9, 0
    %p43 = por %p41, %p42
    %p44 = scmp.ne.s32.totalorder %s33, %s36
    %p45 = scmp.eq.s32.totalorder %s14, 1
    %p46 = por %p44, %p45
    %p47 = scmp.ne.s32.totalorder %s36, %s37
    %p48 = scmp.eq.s32.totalorder %s14, 0
    %p49 = por %p47, %p48
    %p50 = scmp.ne.s32.totalorder %s36, %s37
    %p51 = scmp.eq.s32.totalorder %s15, 1
    %p52 = por %p50, %p51
    %p54 = scmp.ne.s32.totalorder %s37, %s53
    %p55 = scmp.eq.s32.totalorder %s15, 0
    %p56 = por %p54, %p55
    %s58 = sadd.s32 %s57, 1
    %p61 = scmp.eq.s32.totalorder %s9, 1
    %p62 = scmp.ne.s32.totalorder %s57, %s59
    %p63 = scmp.eq.s32.totalorder %s9, 0
    %p64 = por %p62, %p63
    %p65 = scmp.ne.s32.totalorder %s57, %s59
    %p66 = scmp.eq.s32.totalorder %s14, 1
    %p67 = por %p65, %p66
    %p68 = scmp.ne.s32.totalorder %s59, %s60
    %p69 = scmp.eq.s32.totalorder %s14, 0
    %p70 = por %p68, %p69
    %p71 = scmp.ne.s32.totalorder %s59, %s60
    %p72 = scmp.eq.s32.totalorder %s15, 1
    %p73 = por %p71, %p72
    %p75 = scmp.ne.s32.totalorder %s60, %s74
    %p76 = scmp.eq.s32.totalorder %s15, 0
    %p77 = por %p75, %p76
    %s79 = sadd.s32 %s78, 1
    %p82 = scmp.eq.s32.totalorder %s9, 1
    %p83 = scmp.ne.s32.totalorder %s78, %s80
    %p84 = scmp.eq.s32.totalorder %s9, 0
    %p85 = por %p83, %p84
    %p86 = scmp.ne.s32.totalorder %s78, %s80
    %p87 = scmp.eq.s32.totalorder %s14, 1
    %p88 = por %p86, %p87
    %p89 = scmp.ne.s32.totalorder %s80, %s81
    %p90 = scmp.eq.s32.totalorder %s14, 0
    %p91 = por %p89, %p90
    %p92 = scmp.ne.s32.totalorder %s80, %s81
    %p93 = scmp.eq.s32.totalorder %s15, 1
    %p94 = por %p92, %p93
    %p96 = scmp.ne.s32.totalorder %s81, %s95
    %p97 = scmp.eq.s32.totalorder %s15, 0
    %p98 = por %p96, %p97
    %s99 = ssub.s32 %s16, %s28
    %p100 = scmp.eq.s32.totalorder %s99, 0
    %s102 = sadd.s32 %s101, 1
    %s103 = scalar_select %p100, %s101, %s102
    %p106 = pneg %p100
    %p107 = scmp.eq.s32.totalorder %s9, 1
    %p108 = por %p106, %p107
    %p109 = scmp.ne.s32.totalorder %s101, %s104
    %p110 = scmp.eq.s32.totalorder %s9, 0
    %p111 = por %p109, %p110
    %p112 = scmp.ne.s32.totalorder %s101, %s104
    %p113 = scmp.eq.s32.totalorder %s14, 1
    %p114 = por %p112, %p113
    %p115 = scmp.ne.s32.totalorder %s104, %s105
    %p116 = scmp.eq.s32.totalorder %s14, 0
    %p117 = por %p115, %p116
    %p118 = scmp.ne.s32.totalorder %s104, %s105
    %p119 = scmp.eq.s32.totalorder %s15, 1
    %p120 = por %p118, %p119
    %p122 = scmp.ne.s32.totalorder %s105, %s121
    %p123 = scmp.eq.s32.totalorder %s15, 0
    %p124 = por %p122, %p123
    %p125 = scmp.le.s32.totalorder 1, %s9
    %p126 = scmp.lt.s32.totalorder %s9, 3
    %p127 = pnand %p125, %p126
    %p128 = pneg %p127
    // Predicated region
    $region9: #{channel_attention.1} parent=5 // pred_check
      _
    $region10: #{channel_attention.1} parent=5 // pred_check_branch
      %130 = sbr.rel (%p127) target = $region12
    $region11: #{channel_attention.1} parent=5 // pred_region
      %s131 = ssub.s32 %s9, 1
      // Predicated region
      $region13: #{channel_attention.1} parent=11 // pred_check
        %p132 = pneg %p70
      $region14: #{channel_attention.1} parent=11 // pred_check_branch
        %134 = sbr.rel (%p132) target = $region16
      $region15: #{channel_attention.1} parent=11 // pred_region
        _
      $region16: #{channel_attention.1} parent=11 // pred_fallthru
        _
      // Predicated region
      $region17: #{channel_attention.1} parent=11 // pred_check
        %p135 = pneg %p91
      $region18: #{channel_attention.1} parent=11 // pred_check_branch
        %137 = sbr.rel (%p135) target = $region20
      $region19: #{channel_attention.1} parent=11 // pred_region
        _
      $region20: #{channel_attention.1} parent=11 // pred_fallthru
        _
    $region12: #{channel_attention.1} parent=5 // pred_fallthru
      _
    %p138 = scmp.lt.s32.totalorder %s9, 2
    // Predicated region
    $region21: #{channel_attention.1} parent=5 // pred_check
      %p139 = pneg %p138
    $region22: #{channel_attention.1} parent=5 // pred_check_branch
      %141 = sbr.rel (%p139) target = $region24
    $region23: #{channel_attention.1} parent=5 // pred_region
      // Predicated region
      $region25: #{channel_attention.1} parent=23 // pred_check
        %p142 = pneg %p43
      $region26: #{channel_attention.1} parent=23 // pred_check_branch
        %144 = sbr.rel (%p142) target = $region28
      $region27: #{channel_attention.1} parent=23 // pred_region
        %s145 = smul.u32 2, %s17
        %p146 = scmp.lt.s32.totalorder %s16, 1
        %s147 = scalar_select %p146, %s16, 1
        %p148 = scmp.lt.s32.totalorder %s145, 1
        %s149 = scalar_select %p148, %s145, 1
        %s150 = smul.addr %s147, 8
        %s151 = sadd.s32 %s149, %s150
        %s152 = smul.addr %s151, 8
        %s153 = scalar_lea.vmem %s0, %s152
        %s154 = smul.u32 2, %s17
      $region28: #{channel_attention.1} parent=23 // pred_fallthru
        _
    $region24: #{channel_attention.1} parent=5 // pred_fallthru
      _
    %p155 = scmp.le.s32.totalorder 1, %s9
    %p156 = scmp.lt.s32.totalorder %s9, 3
    %p157 = pnand %p155, %p156
    %p158 = pneg %p157
    // Predicated region
    $region29: #{channel_attention.1} parent=5 // pred_check
      _
    $region30: #{channel_attention.1} parent=5 // pred_check_branch
      %160 = sbr.rel (%p157) target = $region32
    $region31: #{channel_attention.1} parent=5 // pred_region
      %s161 = ssub.s32 %s9, 1
      %s162 = smul.u32 2, %s19
      %p163 = scmp.lt.s32.totalorder %s18, 1
      %s164 = scalar_select %p163, %s18, 1
      %p165 = scmp.lt.s32.totalorder %s162, 1
      %s166 = scalar_select %p165, %s162, 1
      %s167 = smul.addr %s164, 8
      %s168 = sadd.s32 %s166, %s167
      %s169 = smul.addr %s168, 8
      %s170 = scalar_lea.vmem %s0, %s169
      %p171 = pneg %p49
      %p172 = pneg %p46
      %p173 = pneg %p70
      %p174 = pneg %p67
      %p175 = pneg %p91
      %p176 = pneg %p88
      %p177 = pneg %p117
      %p178 = pneg %p114
      %p179 = scmp.lt.s32.totalorder %s18, 1
      %s180 = scalar_select %p179, %s18, 1
      %s181 = smul.addr %s180, 4
      %s182 = smul.addr %s181, 8
      %s183 = scalar_lea.vmem %s3, %s182
      %s184 = smul.u32 2, %s19
      %p185 = scmp.lt.s32.totalorder %s18, 1
      %s186 = scalar_select %p185, %s18, 1
      %p187 = scmp.lt.s32.totalorder %s184, 1
      %s188 = scalar_select %p187, %s184, 1
      %s189 = smul.addr %s186, 8
      %s190 = sadd.s32 %s188, %s189
      %s191 = smul.addr %s190, 8
      %s192 = scalar_lea.vmem %s0, %s191
      %s193 = smul.u32 2, %s19
      %p194 = scmp.lt.s32.totalorder %s18, 1
      %s195 = scalar_select %p194, %s18, 1
      %s196 = smul.addr %s195, 4
      %s197 = smul.addr %s196, 8
      %s198 = scalar_lea.vmem %s3, %s197
      %p199 = scmp.eq.s32.totalorder %s19, 0
      // Predicated region
      $region33: #{channel_attention.1} parent=31 // pred_check
        %p200 = pneg %p199
      $region34: #{channel_attention.1} parent=31 // pred_check_branch
        %202 = sbr.rel (%p200) target = $region36
      $region35: #{channel_attention.1} parent=31 // pred_region
        %vm203 = vcmask 7168
        %204 = vst.msk [vmem:[#allocation2] sm:$0xff] %vm203, 0.0
        %205 = vst.msk [vmem:[#allocation2 + $0x8] sm:$0xff] %vm203, 0.0
        %206 = vst.msk [vmem:[#allocation2 + $0x10] sm:$0xff] %vm203, 0.0
        %207 = vst.msk [vmem:[#allocation2 + $0x18] sm:$0xff] %vm203, 0.0
        %208 = vst.msk [vmem:[#allocation3] sm:$0xff] %vm203, -inf
        %209 = vst.msk [vmem:[#allocation3 + $0x8] sm:$0xff] %vm203, -inf
        %210 = vst.msk [vmem:[#allocation3 + $0x10] sm:$0xff] %vm203, -inf
        %211 = vst.msk [vmem:[#allocation3 + $0x18] sm:$0xff] %vm203, -inf
      $region36: #{channel_attention.1} parent=31 // pred_fallthru
        _
      %v212 = vld [vmem:[%s192] sm:$0xff]
      %v213 = vld [vmem:[%s192 + $0x8] sm:$0xff]
      %v214 = vld [vmem:[%s192 + $0x10] sm:$0xff]
      %v215 = vld [vmem:[%s192 + $0x18] sm:$0xff]
      %v216 = vld [vmem:[%s192 + $0x20] sm:$0xff]
      %v217 = vld [vmem:[%s192 + $0x28] sm:$0xff]
      %v218 = vld [vmem:[%s192 + $0x30] sm:$0xff]
      %v219 = vld [vmem:[%s192 + $0x38] sm:$0xff]
      %v220 = vld [vmem:[#allocation2] sm:$0xff]
      %v221 = vld [vmem:[#allocation2 + $0x8] sm:$0xff]
      %v222 = vld [vmem:[#allocation2 + $0x10] sm:$0xff]
      %v223 = vld [vmem:[#allocation2 + $0x18] sm:$0xff]
      %v224 = vadd.f32 %v212, %v213
      %225 = vadd.xlane.f32.xlu0 %v224
      %v226 = vpop.xlane.xlu0 %225
      %v227 = vadd.f32 %v214, %v215
      %228 = vadd.xlane.f32.xlu0 %v227
      %v229 = vpop.xlane.xlu0 %228
      %v230 = vadd.f32 %v216, %v217
      %231 = vadd.xlane.f32.xlu0 %v230
      %v232 = vpop.xlane.xlu0 %231
      %v233 = vadd.f32 %v218, %v219
      %234 = vadd.xlane.f32.xlu0 %v233
      %v235 = vpop.xlane.xlu0 %234
      %v236 = vadd.f32 %v220, %v226
      %v237 = vadd.f32 %v221, %v229
      %v238 = vadd.f32 %v222, %v232
      %v239 = vadd.f32 %v223, %v235
      %vm240 = vcmask 7168
      %241 = vst.msk [vmem:[#allocation2] sm:$0xff] %vm240, %v236
      %242 = vst.msk [vmem:[#allocation2 + $0x8] sm:$0xff] %vm240, %v237
      %243 = vst.msk [vmem:[#allocation2 + $0x10] sm:$0xff] %vm240, %v238
      %244 = vst.msk [vmem:[#allocation2 + $0x18] sm:$0xff] %vm240, %v239
      %v245 = vld [vmem:[#allocation3] sm:$0xff]
      %v246 = vld [vmem:[#allocation3 + $0x8] sm:$0xff]
      %v247 = vld [vmem:[#allocation3 + $0x10] sm:$0xff]
      %v248 = vld [vmem:[#allocation3 + $0x18] sm:$0xff]
      %v249 = vmax.f32 %v212, %v213
      %250 = vmax.xlane.f32.xlu0 %v249
      %v251 = vpop.xlane.xlu0 %250
      %v252 = vmax.f32 %v214, %v215
      %253 = vmax.xlane.f32.xlu0 %v252
      %v254 = vpop.xlane.xlu0 %253
      %v255 = vmax.f32 %v216, %v217
      %256 = vmax.xlane.f32.xlu0 %v255
      %v257 = vpop.xlane.xlu0 %256
      %v258 = vmax.f32 %v218, %v219
      %259 = vmax.xlane.f32.xlu0 %v258
      %v260 = vpop.xlane.xlu0 %259
      %v261 = vmax.f32 %v245, %v251
      %v262 = vmax.f32 %v246, %v254
      %v263 = vmax.f32 %v247, %v257
      %v264 = vmax.f32 %v248, %v260
      %265 = vst.msk [vmem:[#allocation3] sm:$0xff] %vm240, %v261
      %266 = vst.msk [vmem:[#allocation3 + $0x8] sm:$0xff] %vm240, %v262
      %267 = vst.msk [vmem:[#allocation3 + $0x10] sm:$0xff] %vm240, %v263
      %268 = vst.msk [vmem:[#allocation3 + $0x18] sm:$0xff] %vm240, %v264
      // Predicated region
      $region37: #{channel_attention.1} parent=31 // pred_check
        %p269 = pneg %p199
      $region38: #{channel_attention.1} parent=31 // pred_check_branch
        %271 = sbr.rel (%p269) target = $region40
      $region39: #{channel_attention.1} parent=31 // pred_region
        %v272 = vld [vmem:[#allocation2] sm:$0xff]
        %v273 = vld [vmem:[#allocation2 + $0x8] sm:$0xff]
        %v274 = vld [vmem:[#allocation2 + $0x10] sm:$0xff]
        %v275 = vld [vmem:[#allocation2 + $0x18] sm:$0xff]
        %v276 = vmul.f32 %v272, 0.00390625
        %v277 = vmul.f32 %v273, 0.00390625
        %v278 = vmul.f32 %v274, 0.00390625
        %v279 = vmul.f32 %v275, 0.00390625
        %v280 = vld [vmem:[#allocation3] sm:$0xff]
        %v281 = vld [vmem:[#allocation3 + $0x8] sm:$0xff]
        %v282 = vld [vmem:[#allocation3 + $0x10] sm:$0xff]
        %v283 = vld [vmem:[#allocation3 + $0x18] sm:$0xff]
        %288 = vrot.lane.b32.xlu0 %v280, 1
        %v289 = vpop.permute.xlu0 %288
        %290 = vrot.lane.b32.xlu0 %v281, 1
        %v291 = vpop.permute.xlu0 %290
        %292 = vrot.lane.b32.xlu0 %v282, 1
        %v293 = vpop.permute.xlu0 %292
        %294 = vrot.lane.b32.xlu0 %v283, 1
        %v295 = vpop.permute.xlu0 %294
        %v300 = vsel %vm240, %v276, %v289
        %v301 = vsel %vm240, %v277, %v291
        %v302 = vsel %vm240, %v278, %v293
        %v303 = vsel %vm240, %v279, %v295
        %v304 = vld [vmem:[%s1] sm:$0x3]
        %v305 = vld [vmem:[%s2] sm:$0xff]
        %v306 = vld [vmem:[%s2 + $0x8] sm:$0xff]
        %v307 = vld [vmem:[%s2 + $0x10] sm:$0xff]
        %v308 = vld [vmem:[%s2 + $0x18] sm:$0xff]
        %vm309 = vcmask 261120
        %v311 = vsel %vm309, %v304, 0
        %313 = vmatprep.subr.mxu0 0.0
        %314 = vmatpush1.msra.mxu0 %v300
        %315 = vmatprep.subr.mxu0 0.0
        %316 = vmatpush1.msra.mxu0 %v301
        %317 = vmatprep.subr.mxu0 0.0
        %318 = vmatpush1.msra.mxu0 %v302
        %319 = vmatprep.subr.mxu0 0.0
        %320 = vmatpush1.msra.mxu0 %v303
        %321 = vmatprep.subr.mxu0 0.0
        %322 = vmatpush1.msra.mxu0 0.0
        %323 = vmatprep.subr.mxu0 0.0
        %324 = vmatpush1.msra.mxu0 0.0
        %325 = vmatprep.subr.mxu0 0.0
        %326 = vmatpush1.msra.mxu0 0.0
        %327 = vmatprep.subr.mxu0 0.0
        %328 = vmatpush1.msra.mxu0 0.0
        %329 = vmatprep.subr.mxu0 0.0
        %330 = vmatpush1.msra.mxu0 0.0
        %331 = vmatprep.subr.mxu0 0.0
        %332 = vmatpush1.msra.mxu0 0.0
        %333 = vmatprep.subr.mxu0 0.0
        %334 = vmatpush1.msra.mxu0 0.0
        %335 = vmatprep.subr.mxu0 0.0
        %336 = vmatpush1.msra.mxu0 0.0
        %337 = vmatprep.subr.mxu0 0.0
        %338 = vmatpush1.msra.mxu0 0.0
        %339 = vmatprep.subr.mxu0 0.0
        %340 = vmatpush1.msra.mxu0 0.0
        %341 = vmatprep.subr.mxu0 0.0
        %342 = vmatpush1.msra.mxu0 0.0
        %343 = vmatprep.subr.mxu0 0.0
        %344 = vmatpush1.msra.mxu0 0.0
        %345 = vmatprep.subr.mxu0 0.0
        %346 = vmatpush1.msra.mxu0 0.0
        %347 = vmatprep.subr.mxu0 0.0
        %348 = vmatpush1.msra.mxu0 0.0
        %349 = vmatprep.subr.mxu0 0.0
        %350 = vmatpush1.msra.mxu0 0.0
        %351 = vmatprep.subr.mxu0 0.0
        %352 = vmatpush1.msra.mxu0 0.0
        %353 = vmatprep.subr.mxu0 0.0
        %354 = vmatpush1.msra.mxu0 0.0
        %355 = vmatprep.subr.mxu0 0.0
        %356 = vmatpush1.msra.mxu0 0.0
        %357 = vmatprep.subr.mxu0 0.0
        %358 = vmatpush1.msra.mxu0 0.0
        %359 = vmatprep.subr.mxu0 0.0
        %360 = vmatpush1.msra.mxu0 0.0
        %361 = vmatprep.subr.mxu0 0.0
        %362 = vmatpush1.msra.mxu0 0.0
        %363 = vmatprep.subr.mxu0 0.0
        %364 = vmatpush1.msra.mxu0 0.0
        %365 = vmatprep.subr.mxu0 0.0
        %366 = vmatpush1.msra.mxu0 0.0
        %367 = vmatprep.subr.mxu0 0.0
        %368 = vmatpush1.msra.mxu0 0.0
        %369 = vmatprep.subr.mxu0 0.0
        %370 = vmatpush1.msra.mxu0 0.0
        %371 = vmatprep.subr.mxu0 0.0
        %372 = vmatpush1.msra.mxu0 0.0
        %373 = vmatprep.subr.mxu0 0.0
        %374 = vmatpush1.msra.mxu0 0.0
        %375 = vmatprep.subr.mxu0 0.0
        %376 = vmatpush1.msra.mxu0 0.0
        %377 = vmatprep.mubr.f32.mxu0 0.0
        %378 = vmatmul.mubr.f32.gmra.mrb[0].mxu0 %v311
        %v379 = vpop.f32.mrb[0].mxu0
        %v380 = vadd.f32 0.0, %v379
        %v381 = vpop.f32.mrb[0].mxu0
        %382 = vdwg.mxu0
        %v383 = vmax.f32 %v380, 0.0
        %vm384 = vcmask 15360
        %v386 = vsel %vm384, %v305, 0
        %v389 = vsel %vm384, %v306, 0
        %v392 = vsel %vm384, %v307, 0
        %v395 = vsel %vm384, %v308, 0
        %vm397 = vcmask 1041408
        %v399 = vsel %vm397, %v383, 0
        %401 = vmatprep.subr.mxu0 0.0
        %402 = vmatpush1.msra.mxu0 %v399
        %403 = vmatprep.subr.mxu0 0.0
        %404 = vmatpush1.msra.mxu0 0.0
        %405 = vmatprep.subr.mxu0 0.0
        %406 = vmatpush1.msra.mxu0 0.0
        %407 = vmatprep.subr.mxu0 0.0
        %408 = vmatpush1.msra.mxu0 0.0
        %409 = vmatprep.subr.mxu0 0.0
        %410 = vmatpush1.msra.mxu0 0.0
        %411 = vmatprep.subr.mxu0 0.0
        %412 = vmatpush1.msra.mxu0 0.0
        %413 = vmatprep.subr.mxu0 0.0
        %414 = vmatpush1.msra.mxu0 0.0
        %415 = vmatprep.subr.mxu0 0.0
        %416 = vmatpush1.msra.mxu0 0.0
        %417 = vmatprep.subr.mxu0 0.0
        %418 = vmatpush1.msra.mxu0 0.0
        %419 = vmatprep.subr.mxu0 0.0
        %420 = vmatpush1.msra.mxu0 0.0
        %421 = vmatprep.subr.mxu0 0.0
        %422 = vmatpush1.msra.mxu0 0.0
        %423 = vmatprep.subr.mxu0 0.0
        %424 = vmatpush1.msra.mxu0 0.0
        %425 = vmatprep.subr.mxu0 0.0
        %426 = vmatpush1.msra.mxu0 0.0
        %427 = vmatprep.subr.mxu0 0.0
        %428 = vmatpush1.msra.mxu0 0.0
        %429 = vmatprep.subr.mxu0 0.0
        %430 = vmatpush1.msra.mxu0 0.0
        %431 = vmatprep.subr.mxu0 0.0
        %432 = vmatpush1.msra.mxu0 0.0
        %433 = vmatprep.subr.mxu0 0.0
        %434 = vmatpush1.msra.mxu0 0.0
        %435 = vmatprep.subr.mxu0 0.0
        %436 = vmatpush1.msra.mxu0 0.0
        %437 = vmatprep.subr.mxu0 0.0
        %438 = vmatpush1.msra.mxu0 0.0
        %439 = vmatprep.subr.mxu0 0.0
        %440 = vmatpush1.msra.mxu0 0.0
        %441 = vmatprep.subr.mxu0 0.0
        %442 = vmatpush1.msra.mxu0 0.0
        %443 = vmatprep.subr.mxu0 0.0
        %444 = vmatpush1.msra.mxu0 0.0
        %445 = vmatprep.subr.mxu0 0.0
        %446 = vmatpush1.msra.mxu0 0.0
        %447 = vmatprep.subr.mxu0 0.0
        %448 = vmatpush1.msra.mxu0 0.0
        %449 = vmatprep.subr.mxu0 0.0
        %450 = vmatpush1.msra.mxu0 0.0
        %451 = vmatprep.subr.mxu0 0.0
        %452 = vmatpush1.msra.mxu0 0.0
        %453 = vmatprep.subr.mxu0 0.0
        %454 = vmatpush1.msra.mxu0 0.0
        %455 = vmatprep.subr.mxu0 0.0
        %456 = vmatpush1.msra.mxu0 0.0
        %457 = vmatprep.subr.mxu0 0.0
        %458 = vmatpush1.msra.mxu0 0.0
        %459 = vmatprep.subr.mxu0 0.0
        %460 = vmatpush1.msra.mxu0 0.0
        %461 = vmatprep.subr.mxu0 0.0
        %462 = vmatpush1.msra.mxu0 0.0
        %463 = vmatprep.subr.mxu0 0.0
        %464 = vmatpush1.msra.mxu0 0.0
        %465 = vmatprep.mubr.f32.mxu0 0.0
        %466 = vmatmul.mubr.f32.gmra.mrb[0].mxu0 %v386
        %v467 = vpop.f32.mrb[0].mxu0
        %v468 = vadd.f32 0.0, %v467
        %v469 = vpop.f32.mrb[0].mxu0
        %470 = vmatprep.mubr.f32.mxu0 0.0
        %471 = vmatmul.mubr.f32.gmra.mrb[0].mxu0 %v389
        %v472 = vpop.f32.mrb[0].mxu0
        %v473 = vadd.f32 0.0, %v472
        %v474 = vpop.f32.mrb[0].mxu0
        %475 = vmatprep.mubr.f32.mxu0 0.0
        %476 = vmatmul.mubr.f32.gmra.mrb[0].mxu0 %v392
        %v477 = vpop.f32.mrb[0].mxu0
        %v478 = vadd.f32 0.0, %v477
        %v479 = vpop.f32.mrb[0].mxu0
        %480 = vmatprep.mubr.f32.mxu0 0.0
        %481 = vmatmul.mubr.f32.gmra.mrb[0].mxu0 %v395
        %v482 = vpop.f32.mrb[0].mxu0
        %v483 = vadd.f32 0.0, %v482
        %v484 = vpop.f32.mrb[0].mxu0
        %485 = vdwg.mxu0
        %490 = vrot.lane.b32.xlu0 %v468, 127
        %v491 = vpop.permute.xlu0 %490
        %492 = vrot.lane.b32.xlu0 %v473, 127
        %v493 = vpop.permute.xlu0 %492
        %494 = vrot.lane.b32.xlu0 %v478, 127
        %v495 = vpop.permute.xlu0 %494
        %496 = vrot.lane.b32.xlu0 %v483, 127
        %v497 = vpop.permute.xlu0 %496
        %v502 = vadd.f32 %v468, %v491
        %v503 = vadd.f32 %v473, %v493
        %v504 = vadd.f32 %v478, %v495
        %v505 = vadd.f32 %v483, %v497
        %v506 = vxor.u32 %v502, 2147483648
        %v507 = vxor.u32 %v503, 2147483648
        %v508 = vxor.u32 %v504, 2147483648
        %v509 = vxor.u32 %v505, 2147483648
        %v510 = vmul.f32 %v506, 1.442695
        %v511 = vpow.pop %v510
        %v512 = vmul.f32 %v507, 1.442695
        %v513 = vpow.pop %v512
        %v514 = vmul.f32 %v508, 1.442695
        %v515 = vpow.pop %v514
        %v516 = vmul.f32 %v509, 1.442695
        %v517 = vpow.pop %v516
        %v518 = vadd.f32 %v511, 1.0
        %v519 = vadd.f32 %v513, 1.0
        %v520 = vadd.f32 %v515, 1.0
        %v521 = vadd.f32 %v517, 1.0
        %v522 = vrcp.pop %v518
        %v523 = vmul.f32 1.0, %v522
        %v524 = vrcp.pop %v519
        %v525 = vmul.f32 1.0, %v524
        %v526 = vrcp.pop %v520
        %v527 = vmul.f32 1.0, %v526
        %v528 = vrcp.pop %v521
        %v529 = vmul.f32 1.0, %v528
        %530 = vst.msk [vmem:[%s198] sm:$0xff] %vm240, %v523
        %531 = vst.msk [vmem:[%s198 + $0x8] sm:$0xff] %vm240, %v525
        %532 = vst.msk [vmem:[%s198 + $0x10] sm:$0xff] %vm240, %v527
        %533 = vst.msk [vmem:[%s198 + $0x18] sm:$0xff] %vm240, %v529
      $region40: #{channel_attention.1} parent=31 // pred_fallthru
        _
      %p534 = scmp.lt.s32.totalorder %s18, 1
      %s535 = scalar_select %p534, %s18, 1
      %s536 = smul.addr %s535, 4
      %s537 = smul.addr %s536, 8
      %s538 = scalar_lea.vmem %s3, %s537
      // Predicated region
      $region41: #{channel_attention.1} parent=31 // pred_check
        %p539 = pneg %p114
      $region42: #{channel_attention.1} parent=31 // pred_check_branch
        %541 = sbr.rel (%p539) target = $region44
      $region43: #{channel_attention.1} parent=31 // pred_region
        _
      $region44: #{channel_attention.1} parent=31 // pred_fallthru
        _
    $region32: #{channel_attention.1} parent=5 // pred_fallthru
      _
    %p542 = scmp.le.s32.totalorder 2, %s9
    // Predicated region
    $region45: #{channel_attention.1} parent=5 // pred_check
      %p543 = pneg %p542
    $region46: #{channel_attention.1} parent=5 // pred_check_branch
      %545 = sbr.rel (%p543) target = $region48
    $region47: #{channel_attention.1} parent=5 // pred_region
      %s546 = ssub.s32 %s9, 2
      // Predicated region
      $region49: #{channel_attention.1} parent=47 // pred_check
        %p547 = pneg %p120
      $region50: #{channel_attention.1} parent=47 // pred_check_branch
        %549 = sbr.rel (%p547) target = $region52
      $region51: #{channel_attention.1} parent=47 // pred_region
        %p550 = scmp.lt.s32.totalorder %s20, 1
        %s551 = scalar_select %p550, %s20, 1
        %s552 = smul.addr %s551, 4
        %s553 = smul.addr %s552, 8
        %s554 = scalar_lea.vmem %s3, %s553
      $region52: #{channel_attention.1} parent=47 // pred_fallthru
        _
    $region48: #{channel_attention.1} parent=5 // pred_fallthru
      _
  $region6: #{channel_attention.1} parent=0 // loop_footer
    %s13 = sadd.s32 1, %s9
  $region7: #{channel_attention.1} parent=0 // loop_footer_branch
    %8 = sbr.rel target = $region3
  $region8: #{channel_attention.1} parent=0 // loop_exit
    _

</llo_original>
